<compile_context>
chip_gen: v5e
topology: v5e:2x2
jax: 0.10.0
libtpu: 0.0.40
codegen_flags: <defaults>
</compile_context>

<pallas_src>
import math
import functools

import jax
import jax.numpy as jnp
from jax.experimental import pallas as pl
from jax.experimental.pallas import tpu as pltpu


# ----------------------------------------------------------------------------
# Parameter ("buffer") construction — deterministic, mirrors PyTorch __init__.
# ----------------------------------------------------------------------------
def make_positional_encoding(d_model: int, max_len: int = 256) -> jnp.ndarray:
    position = jnp.arange(0, max_len, dtype=jnp.float32)[:, None]          # (max_len, 1)
    div_term = jnp.exp(jnp.arange(0, d_model, 2, dtype=jnp.float32)
                       * (-math.log(10000.0) / d_model))                   # (d_model/2,)
    ang = position * div_term                                              # (max_len, d_model/2)
    enc = jnp.zeros((max_len, d_model), dtype=jnp.float32)
    enc = enc.at[:, 0::2].set(jnp.sin(ang))
    enc = enc.at[:, 1::2].set(jnp.cos(ang))
    return enc                                                             # (max_len, d_model)


# ----------------------------------------------------------------------------
# Pallas kernels.
# ----------------------------------------------------------------------------
def pe_add_kernel(x_ref, pe_ref, o_ref):
    # Eval mode: dropout == identity, so this is a pure broadcast-add.
    o_ref[...] = (x_ref[...] + pe_ref[...]).astype(o_ref.dtype)


def pe_add_dropout_kernel(seed_ref, x_ref, pe_ref, o_ref, *, keep_prob: float):
    # Training mode: inverted dropout on the VPU using the hardware PRNG.
    # NOTE: mask is seeded per tile (seed + program_id), so changing the tiling
    # changes the random mask; it cannot bit-match torch's RNG.
    y = x_ref[...] + pe_ref[...]
    pltpu.prng_seed(seed_ref[0] + pl.program_id(0))
    bits = pltpu.prng_random_bits(y.shape)
    if bits.dtype != jnp.uint32:
        bits = pltpu.bitcast(bits, jnp.uint32)
    # Integer threshold compare: no shift, no int->float cast, no 2^-24 multiply.
    threshold = jnp.uint32(min(int(round(keep_prob * float(1 << 32))), (1 << 32) - 1))
    keep = bits < threshold
    y = jnp.where(keep, y * jnp.float32(1.0 / keep_prob), jnp.zeros_like(y))
    o_ref[...] = y.astype(o_ref.dtype)


# ----------------------------------------------------------------------------
# Wrapper: layout plumbing + tile sizing + pallas_call.
# ----------------------------------------------------------------------------
_TARGET_TILE_BYTES = 2 * 1024 * 1024   # per tile; x4 (in+out, double-buffered) << VMEM budget


def _round_up(x: int, m: int) -> int:
    return ((x + m - 1) // m) * m


def positional_encoder_forward(x: jnp.ndarray,
                               encoding: jnp.ndarray,
                               *,
                               dropout: float = 0.1,
                               training: bool = False,
                               seed: int = 0) -> jnp.ndarray:
    """x: (S, B, D); encoding: (max_len, D).  Returns (S, B, D)."""
    S, B, D = x.shape
    # Matches `self.positional_encoding[x.size(0), :]` -> a single (1, d_model) row.
    # TODO(synk): for S >= max_len dynamic_slice clamps the index whereas PyTorch raises IndexError.
    pe_row = jax.lax.dynamic_slice(encoding, (S, 0), (1, D)).astype(x.dtype)   # (1, D)

    rows = S * B

    # --- lane-dense layout: pack narrow D into full 128-lane rows when possible ---
    if D < 128 and 128 % D == 0 and (rows * D) % 128 == 0:
        lane_w = 128
        x2 = x.reshape(-1, 128)                           # (rows*D/128, 128)
        pe2 = jnp.tile(pe_row, (1, 128 // D))             # (1, 128): PE pattern repeats per row
    else:
        lane_w = D
        x2 = x.reshape(rows, D)
        pe2 = pe_row
    n_rows = x2.shape[0]

    # --- tile sizing: big (~2 MiB) HBM-roofline tiles, >=2 grid steps when possible ---
    itemsize = jnp.dtype(x.dtype).itemsize
    bytes_per_row = lane_w * itemsize
    tm_cap = max(8, (_TARGET_TILE_BYTES // bytes_per_row) // 8 * 8)
    if n_rows % 8 != 0 and n_rows <= 2 * tm_cap:
        tm = n_rows                                       # tiny / ragged: one full-extent block
    else:
        tm = max(8, min(tm_cap, _round_up(pl.cdiv(n_rows, 2), 8)))
    grid = (pl.cdiv(n_rows, tm),)                         # partial last block handled by Pallas

    compiler_params = pltpu.CompilerParams(
        dimension_semantics=("parallel",),                # shards grid across v7x's 2 TCs
        vmem_limit_bytes=32 * 1024 * 1024,
    )
    out_shape = jax.ShapeDtypeStruct((n_rows, lane_w), x.dtype)
    x_block = (tm, lane_w)
    pe_block = (1, lane_w)

    if training and dropout > 0.0:
        kernel = functools.partial(pe_add_dropout_kernel, keep_prob=1.0 - dropout)
        out = pl.pallas_call(
            kernel,
            out_shape=out_shape,
            grid_spec=pltpu.PrefetchScalarGridSpec(
                num_scalar_prefetch=1,                                       # seed -> SMEM
                grid=grid,
                in_specs=[pl.BlockSpec(x_block, lambda i, seed_ref: (i, 0)),
                          pl.BlockSpec(pe_block, lambda i, seed_ref: (0, 0))],
                out_specs=pl.BlockSpec(x_block, lambda i, seed_ref: (i, 0)),
            ),
            compiler_params=compiler_params,
        )(jnp.array([seed], dtype=jnp.int32), x2, pe2)
    else:
        # Eval path: no seed prefetch, no dropout code path compiled into the kernel.
        out = pl.pallas_call(
            pe_add_kernel,
            out_shape=out_shape,
            grid=grid,
            in_specs=[pl.BlockSpec(x_block, lambda i: (i, 0)),
                      pl.BlockSpec(pe_block, lambda i: (0, 0))],
            out_specs=pl.BlockSpec(x_block, lambda i: (i, 0)),
            compiler_params=compiler_params,
        )(x2, pe2)

    return out.reshape(S, B, D)


# ----------------------------------------------------------------------------
if __name__ == "__main__":
    d_model = 32
    max_len = 256
    seq_len = 8
    batch = 2

    key = jax.random.PRNGKey(0)
    x = jax.random.normal(key, (seq_len, batch, d_model), dtype=jnp.float32)

    encoding = make_positional_encoding(d_model, max_len)

    # Eval mode (dropout == identity), matching module.eval() in PyTorch.
    out = positional_encoder_forward(x, encoding, dropout=0.1, training=False)
    out = jax.block_until_ready(out)

    # Pure-JAX reference of the exact PyTorch forward (eval mode).
    ref = x + encoding[seq_len][None, None, :]
    assert out.shape == (seq_len, batch, d_model)
    assert jnp.allclose(out, ref, atol=1e-6, rtol=1e-6), "mismatch vs reference"

    print("KERNEL_OK")
</pallas_src>

<mosaic_0001>
module attributes {stable_mosaic.version = 11 : i64} {
  func.func @pe_add_kernel(%arg0: i32, %arg1: memref<4x128xf32, #tpu.memory_space<vmem>>, %arg2: memref<1x128xf32, #tpu.memory_space<vmem>>, %arg3: memref<4x128xf32, #tpu.memory_space<vmem>>) attributes {dimension_semantics = [#tpu.dimension_semantics<parallel>], iteration_bounds = array<i64: 1>, scalar_prefetch = 0 : i64, scratch_operands = 0 : i64, tpu.core_type = #tpu.core_type<tc>, window_params = [{transform_indices = @transform_0, window_bounds = array<i64: 4, 128>}, {pipeline_mode = #tpu.pipeline_mode<synchronous>, transform_indices = @transform_1, window_bounds = array<i64: 1, 128>}, {transform_indices = @transform_2, window_bounds = array<i64: 4, 128>}]} {
    %c0 = arith.constant 0 : index
    %c0_0 = arith.constant 0 : index
    %0 = vector.load %arg1[%c0, %c0_0] : memref<4x128xf32, #tpu.memory_space<vmem>>, vector<4x128xf32>
    %c0_1 = arith.constant 0 : index
    %c0_2 = arith.constant 0 : index
    %1 = vector.load %arg2[%c0_1, %c0_2] : memref<1x128xf32, #tpu.memory_space<vmem>>, vector<1x128xf32>
    %2 = vector.broadcast %1 : vector<1x128xf32> to vector<4x128xf32>
    %3 = arith.addf %0, %2 : vector<4x128xf32>
    %c0_3 = arith.constant 0 : index
    %c0_4 = arith.constant 0 : index
    %4 = vector.load %arg3[%c0_3, %c0_4] : memref<4x128xf32, #tpu.memory_space<vmem>>, vector<4x128xf32>
    tpu.vector_store %arg3[%c0_3, %c0_4], %3 {strides = array<i32>} : memref<4x128xf32, #tpu.memory_space<vmem>>, vector<4x128xf32>,
    return
  }
  func.func @transform_0(%arg0: i32) -> (i32, i32) {
    %c0_i32 = arith.constant 0 : i32
    %c0_i32_0 = arith.constant 0 : i32
    return %arg0, %c0_i32 : i32, i32
  }
  func.func @transform_1(%arg0: i32) -> (i32, i32) {
    %c0_i32 = arith.constant 0 : i32
    %c0_i32_0 = arith.constant 0 : i32
    %c0_i32_1 = arith.constant 0 : i32
    return %c0_i32, %c0_i32_0 : i32, i32
  }
  func.func @transform_2(%arg0: i32) -> (i32, i32) {
    %c0_i32 = arith.constant 0 : i32
    %c0_i32_0 = arith.constant 0 : i32
    return %arg0, %c0_i32 : i32, i32
  }
}

</mosaic_0001>

<llo_original>
// kernel: tpu_custom_call.1
$region0: #{tpu_custom_call.1}
  #allocation0 [shape = 'u32[]', space=smem, size = 0x4, offset = 0x4, fixed_abs, tag = 'smem constant byte address 0x4 - core index']
  #allocation1 [shape = 'u32[72,128]{1,0:T(1,128)}', space=vmem, size = 0x9000, scoped, tag = 'internal scratch']
  %s0 = inlined_call_operand.hbm [shape: f32[4,128], index: 0, kind: input, shape index: {}]
  %s1 = inlined_call_operand.hbm [shape: f32[1,128], index: 1, kind: input, shape index: {}]
  %s2 = inlined_call_operand.hbm [shape: f32[4,128], index: 2, kind: output, shape index: {}]
  %s3 = sld [smem:[#allocation0]]
  $region26: #{tpu_custom_call.1} parent=0
    _
  %s5 = ssub.s32 1, %s3
  %s6 = scalar_select 0, %s5, %s3
  $region1: #{tpu_custom_call.1} parent=0
    #allocation2 [shape = 'u8[2048]{0}', space=vmem, size = 0x800, scoped, tag = 'input window, operand 0, single buffered']
    #allocation3 [shape = 's32[1]{0}', space=sflag, size = 0x4, scoped, tag = 'scoped memory for tpu_custom_call.1']
    #allocation4 [shape = 's32[1]{0}', space=sflag, size = 0x4, scoped, tag = 'scoped memory for tpu_custom_call.1']
    #allocation5 [shape = 'u8[512]{0}', space=vmem, size = 0x400, scoped, tag = 'input window, operand 1, single buffered']
    #allocation6 [shape = 's32[1]{0}', space=sflag, size = 0x4, scoped, tag = 'scoped memory for tpu_custom_call.1']
    #allocation7 [shape = 'u8[2048]{0}', space=vmem, size = 0x800, scoped, tag = 'output window, operand 0, single buffered']
    %7 = vsyncpa [#allocation3], 0
    %8 = vsyncpa [#allocation6], 0
    %9 = vsyncpa [#allocation4], 0
    // Predicated region
    $region2: #{tpu_custom_call.1} parent=1 // pred_check
      _
    $region3: #{tpu_custom_call.1} parent=1 // pred_check_branch
      %11 = sbr.rel (0) target = $region5
    $region4: #{tpu_custom_call.1} parent=1 // pred_region
      %13 = vsyncadd [#allocation3], 0
      %s15 = sshll.u32 %s0, 4
      %s16 = int_to_ptr.hbm [resolvable:$true] %s15
      %s17 = sshll.u32 [#allocation2], 4
      %s18 = int_to_ptr.vmem [resolvable:$true] %s17
      %20 = dma.hbm_to_vmem [thread:$0]  %s16, 64, %s18, [#allocation3]
    $region5: #{tpu_custom_call.1} parent=1 // pred_fallthru
      _
    // Predicated region
    $region6: #{tpu_custom_call.1} parent=1 // pred_check
      _
    $region7: #{tpu_custom_call.1} parent=1 // pred_check_branch
      %22 = sbr.rel (0) target = $region9
    $region8: #{tpu_custom_call.1} parent=1 // pred_region
      %24 = vsyncadd [#allocation6], 0
      %s26 = sshll.u32 %s1, 4
      %s27 = int_to_ptr.hbm [resolvable:$true] %s26
      %s28 = sshll.u32 [#allocation5], 4
      %s29 = int_to_ptr.vmem [resolvable:$true] %s28
      %31 = dma.hbm_to_vmem [thread:$0]  %s27, 16, %s29, [#allocation6]
    $region9: #{tpu_custom_call.1} parent=1 // pred_fallthru
      _
    // Predicated region
    $region10: #{tpu_custom_call.1} parent=1 // pred_check
      _
    $region11: #{tpu_custom_call.1} parent=1 // pred_check_branch
      %33 = sbr.rel (0) target = $region13
    $region12: #{tpu_custom_call.1} parent=1 // pred_region
      %35 = dma.done [#allocation3], 64
    $region13: #{tpu_custom_call.1} parent=1 // pred_fallthru
      _
    // Predicated region
    $region14: #{tpu_custom_call.1} parent=1 // pred_check
      _
    $region15: #{tpu_custom_call.1} parent=1 // pred_check_branch
      %37 = sbr.rel (0) target = $region17
    $region16: #{tpu_custom_call.1} parent=1 // pred_region
      %39 = dma.done [#allocation6], 16
    $region17: #{tpu_custom_call.1} parent=1 // pred_fallthru
      _
    %v40 = vld [vmem:[#allocation2] sm:$0xf]
    %v41 = vld [vmem:[#allocation5] sm:$0x1]
    %v43 = vperm.slane %v41, 0
    %v45 = vadd.f32 %v40, %v43
    %46 = vst [vmem:[#allocation7] sm:$0xf] %v45
    // Predicated region
    $region18: #{tpu_custom_call.1} parent=1 // pred_check
      _
    $region19: #{tpu_custom_call.1} parent=1 // pred_check_branch
      %48 = sbr.rel (0) target = $region21
    $region20: #{tpu_custom_call.1} parent=1 // pred_region
      %50 = vsyncadd [#allocation4], 0
      %s52 = sshll.u32 [#allocation7], 4
      %s53 = int_to_ptr.vmem [resolvable:$true] %s52
      %s54 = sshll.u32 %s2, 4
      %s55 = int_to_ptr.hbm [resolvable:$true] %s54
      %57 = dma.vmem_to_hbm [thread:$0]  %s53, 64, %s55, [#allocation4]
    $region21: #{tpu_custom_call.1} parent=1 // pred_fallthru
      _
    // Predicated region
    $region22: #{tpu_custom_call.1} parent=1 // pred_check
      _
    $region23: #{tpu_custom_call.1} parent=1 // pred_check_branch
      %59 = sbr.rel (0) target = $region25
    $region24: #{tpu_custom_call.1} parent=1 // pred_region
      %61 = dma.done [#allocation4], 64
    $region25: #{tpu_custom_call.1} parent=1 // pred_fallthru
      _
    %62 = vsyncpa [#allocation3], 1
    %63 = vsyncpa [#allocation6], 1
    %64 = vsyncpa [#allocation4], 1

</llo_original>
